<compile_context>
chip_gen: v5e
topology: v5e:2x2
jax: 0.10.0
libtpu: 0.0.40
codegen_flags: <defaults>
</compile_context>

<pallas_src>
import functools

import jax
import jax.numpy as jnp
from jax.experimental import pallas as pl
from jax.experimental.pallas import tpu as pltpu


# ------------------------------ Pallas kernel -------------------------------

def _matmul_relu_bn_kernel(cols_ref, w_ref, params_ref, o_ref, *, compute_dtype):
    """One row tile:  (TM, K) @ (K, Cout)  ->  +bias  ->  ReLU  ->  BN affine."""
    x = cols_ref[...]
    w = w_ref[...]
    if compute_dtype is not None:
        # optional bf16 MXU path (v6e/v7x); accumulation stays f32 below
        x = x.astype(compute_dtype)
        w = w.astype(compute_dtype)
    acc = jnp.dot(x, w, preferred_element_type=jnp.float32)     # single MXU matmul
    p = params_ref[...]                                          # (8, Cout) f32
    bias = p[0:1, :]                                             # conv bias
    scale = p[1:2, :]                                            # BN gamma / sqrt(var+eps)
    shift = p[2:3, :]                                            # BN beta - mean*scale
    y = jnp.maximum(acc + bias, 0.0)                             # + bias, ReLU
    # BatchNorm (eval mode) as per-channel scale/shift, applied AFTER the ReLU
    o_ref[...] = (y * scale + shift).astype(o_ref.dtype)


# --------------------------------- wrapper ----------------------------------

def conv2d_relu_bn(x_nhwc, w_hwio, bias, gamma, beta, running_mean, running_var,
                   *, stride=1, padding=1, dilation=1, eps=1e-5,
                   row_block=128, compute_dtype=None):
    """Conv2DReLUBN forward: conv2d -> ReLU -> BatchNorm2d (eval-mode stats).

    x_nhwc: (N, H, W, Cin) f32.  w_hwio: (KH, KW, Cin, Cout).  bias/gamma/beta/
    running_mean/running_var: (Cout,).  Returns (N, Hout, Wout, Cout).
    """
    # TODO(synk): training-mode BatchNorm (batch statistics of relu(conv(x)))
    # needs a second stats-reduction pass over the conv output; only the
    # eval-mode running-stats affine is fused here.
    N, H, W, Cin = x_nhwc.shape
    KH, KW, Cin_w, Cout = w_hwio.shape
    assert Cin_w == Cin
    Hout = (H + 2 * padding - dilation * (KH - 1) - 1) // stride + 1
    Wout = (W + 2 * padding - dilation * (KW - 1) - 1) // stride + 1

    # --- im2col, built ONCE in the wrapper: pad + KH*KW shifted/strided windows
    #     concatenated on the channel axis (ordering matches HWIO weight flatten).
    xp = jnp.pad(x_nhwc, ((0, 0), (padding, padding), (padding, padding), (0, 0)))
    taps = []
    for kh in range(KH):
        for kw in range(KW):
            h0, w0 = kh * dilation, kw * dilation
            taps.append(jax.lax.slice(
                xp,
                (0, h0, w0, 0),
                (N, h0 + (Hout - 1) * stride + 1, w0 + (Wout - 1) * stride + 1, Cin),
                (1, stride, stride, 1)))
    K = KH * KW * Cin
    cols = jnp.concatenate(taps, axis=-1).reshape(N * Hout * Wout, K)

    # weight flattened to match the (kh, kw, cin) im2col ordering
    wf = w_hwio.reshape(K, Cout)

    # eval-mode BatchNorm folded into a per-channel affine (applied post-ReLU);
    # pack bias/scale/shift into a single sublane-aligned (8, Cout) operand.
    inv_std = 1.0 / jnp.sqrt(running_var + eps)
    scale = gamma * inv_std
    shift = beta - running_mean * gamma * inv_std
    params = jnp.zeros((8, Cout), jnp.float32)
    params = params.at[0].set(bias).at[1].set(scale).at[2].set(shift)

    # --- tiling: 1-D grid over row tiles of the (M, K) im2col matrix
    M = N * Hout * Wout
    TM = min(row_block, pl.cdiv(M, 8) * 8)   # sublane-aligned row tile
    Mp = pl.cdiv(M, TM) * TM
    if Mp != M:
        cols = jnp.pad(cols, ((0, Mp - M), (0, 0)))
    grid = (Mp // TM,)

    itemsize = x_nhwc.dtype.itemsize
    cost = pl.CostEstimate(
        flops=2 * M * K * Cout + 4 * M * Cout,
        transcendentals=0,
        bytes_accessed=(Mp * K + K * Cout + 8 * Cout + Mp * Cout) * itemsize)

    out = pl.pallas_call(
        functools.partial(_matmul_relu_bn_kernel, compute_dtype=compute_dtype),
        out_shape=jax.ShapeDtypeStruct((Mp, Cout), x_nhwc.dtype),
        grid=grid,
        in_specs=[
            pl.BlockSpec((TM, K), lambda i: (i, 0)),      # im2col row tile
            pl.BlockSpec((K, Cout), lambda i: (0, 0)),    # weights (resident)
            pl.BlockSpec((8, Cout), lambda i: (0, 0)),    # bias / BN scale / BN shift
        ],
        out_specs=pl.BlockSpec((TM, Cout), lambda i: (i, 0)),
        compiler_params=pltpu.CompilerParams(
            dimension_semantics=("parallel",),            # megacore sharding
            vmem_limit_bytes=32 * 1024 * 1024),
        cost_estimate=cost,
    )(cols, wf, params)

    return out[:M].reshape(N, Hout, Wout, Cout)


# ------------------------- pure-JAX reference check -------------------------

def _reference(x_nhwc, w_hwio, bias, gamma, beta, mean, var, *,
               stride, padding, dilation, eps):
    y = jax.lax.conv_general_dilated(
        x_nhwc, w_hwio,
        window_strides=(stride, stride),
        padding=((padding, padding), (padding, padding)),
        rhs_dilation=(dilation, dilation),
        dimension_numbers=("NHWC", "HWIO", "NHWC"),
        precision=jax.lax.Precision.HIGHEST)
    y = jnp.maximum(y + bias, 0.0)
    return (y - mean) / jnp.sqrt(var + eps) * gamma + beta


# ----------------------------------- main ------------------------------------

if __name__ == "__main__":
    # Conv2DReLUBN(input_channels=4, layer_width=128, kernel_size=3, padding=1,
    #              dilation=1, stride=1) on a small NCHW input.
    N, Cin, H, W = 2, 4, 16, 16
    Cout = 128
    KH = KW = 3
    stride, padding, dilation, eps = 1, 1, 1, 1e-5

    key = jax.random.PRNGKey(0)
    kx, kwt, kb, kg, kbe, km, kv = jax.random.split(key, 7)

    # PyTorch-style NCHW input / OIHW weight, transposed once at the boundary.
    x_nchw = jax.random.normal(kx, (N, Cin, H, W), jnp.float32)
    fan_in = Cin * KH * KW
    w_oihw = jax.random.normal(kwt, (Cout, Cin, KH, KW), jnp.float32) * (2.0 / fan_in) ** 0.5
    conv_bias = jax.random.uniform(kb, (Cout,), jnp.float32,
                                   minval=-1.0 / fan_in ** 0.5,
                                   maxval=1.0 / fan_in ** 0.5)
    # BatchNorm2d state (values as if loaded from a trained checkpoint; a fresh
    # PyTorch module would have gamma=1, beta=0, running_mean=0, running_var=1).
    gamma = jax.random.uniform(kg, (Cout,), jnp.float32, minval=0.5, maxval=1.5)
    beta = 0.1 * jax.random.normal(kbe, (Cout,), jnp.float32)
    running_mean = 0.1 * jax.random.normal(km, (Cout,), jnp.float32)
    running_var = jax.random.uniform(kv, (Cout,), jnp.float32, minval=0.5, maxval=1.5)

    x_nhwc = jnp.transpose(x_nchw, (0, 2, 3, 1))          # NCHW -> NHWC
    w_hwio = jnp.transpose(w_oihw, (2, 3, 1, 0))          # OIHW -> HWIO

    fwd = jax.jit(functools.partial(
        conv2d_relu_bn, stride=stride, padding=padding, dilation=dilation, eps=eps))
    out = jax.block_until_ready(
        fwd(x_nhwc, w_hwio, conv_bias, gamma, beta, running_mean, running_var))

    assert out.shape == (N, H, W, Cout), out.shape
    assert bool(jnp.all(jnp.isfinite(out)))

    ref = _reference(x_nhwc, w_hwio, conv_bias, gamma, beta, running_mean,
                     running_var, stride=stride, padding=padding,
                     dilation=dilation, eps=eps)
    max_err = float(jnp.max(jnp.abs(out - ref)))
    assert max_err < 5e-3, max_err

    print("KERNEL_OK")
</pallas_src>

<mosaic_0001>
module attributes {stable_mosaic.version = 11 : i64} {
  func.func @_matmul_relu_bn_kernel(%arg0: i32, %arg1: memref<128x36xf32, #tpu.memory_space<vmem>>, %arg2: memref<36x128xf32, #tpu.memory_space<vmem>>, %arg3: memref<8x128xf32, #tpu.memory_space<vmem>>, %arg4: memref<128x128xf32, #tpu.memory_space<vmem>>) attributes {dimension_semantics = [#tpu.dimension_semantics<parallel>], iteration_bounds = array<i64: 4>, scalar_prefetch = 0 : i64, scratch_operands = 0 : i64, tpu.core_type = #tpu.core_type<tc>, window_params = [{transform_indices = @transform_0, window_bounds = array<i64: 128, 36>}, {pipeline_mode = #tpu.pipeline_mode<synchronous>, transform_indices = @transform_1, window_bounds = array<i64: 36, 128>}, {pipeline_mode = #tpu.pipeline_mode<synchronous>, transform_indices = @transform_2, window_bounds = array<i64: 8, 128>}, {transform_indices = @transform_3, window_bounds = array<i64: 128, 128>}]} {
    %c0 = arith.constant 0 : index
    %c0_0 = arith.constant 0 : index
    %0 = vector.load %arg1[%c0, %c0_0] : memref<128x36xf32, #tpu.memory_space<vmem>>, vector<128x36xf32>
    %c0_1 = arith.constant 0 : index
    %c0_2 = arith.constant 0 : index
    %1 = vector.load %arg2[%c0_1, %c0_2] : memref<36x128xf32, #tpu.memory_space<vmem>>, vector<36x128xf32>
    %cst = arith.constant dense<0.000000e+00> : vector<128x128xf32>
    %2 = tpu.matmul %0, %1, %cst {dimension_numbers = #tpu.dot_dimension_numbers<[1], [0], [0], [1], [0, 0, 1, 1], [], []>} : vector<128x36xf32>, vector<36x128xf32>, vector<128x128xf32> -> vector<128x128xf32>
    %c0_3 = arith.constant 0 : index
    %c0_4 = arith.constant 0 : index
    %3 = vector.load %arg3[%c0_3, %c0_4] : memref<8x128xf32, #tpu.memory_space<vmem>>, vector<8x128xf32>
    %4 = vector.extract_strided_slice %3 {offsets = [0, 0], sizes = [1, 128], strides = [1, 1]} : vector<8x128xf32> to vector<1x128xf32>
    %5 = vector.extract_strided_slice %3 {offsets = [1, 0], sizes = [1, 128], strides = [1, 1]} : vector<8x128xf32> to vector<1x128xf32>
    %6 = vector.extract_strided_slice %3 {offsets = [2, 0], sizes = [1, 128], strides = [1, 1]} : vector<8x128xf32> to vector<1x128xf32>
    %7 = vector.broadcast %4 : vector<1x128xf32> to vector<128x128xf32>
    %8 = arith.addf %2, %7 : vector<128x128xf32>
    %cst_5 = arith.constant 0.000000e+00 : f32
    %9 = vector.broadcast %cst_5 : f32 to vector<128x128xf32>
    %10 = arith.maximumf %8, %9 : vector<128x128xf32>
    %11 = vector.broadcast %5 : vector<1x128xf32> to vector<128x128xf32>
    %12 = arith.mulf %10, %11 : vector<128x128xf32>
    %13 = vector.broadcast %6 : vector<1x128xf32> to vector<128x128xf32>
    %14 = arith.addf %12, %13 : vector<128x128xf32>
    %c0_6 = arith.constant 0 : index
    %c0_7 = arith.constant 0 : index
    %15 = vector.load %arg4[%c0_6, %c0_7] : memref<128x128xf32, #tpu.memory_space<vmem>>, vector<128x128xf32>
    tpu.vector_store %arg4[%c0_6, %c0_7], %14 {strides = array<i32>} : memref<128x128xf32, #tpu.memory_space<vmem>>, vector<128x128xf32>,
    return
  }
  func.func @transform_0(%arg0: i32) -> (i32, i32) {
    %c0_i32 = arith.constant 0 : i32
    %c0_i32_0 = arith.constant 0 : i32
    return %arg0, %c0_i32 : i32, i32
  }
  func.func @transform_1(%arg0: i32) -> (i32, i32) {
    %c0_i32 = arith.constant 0 : i32
    %c0_i32_0 = arith.constant 0 : i32
    %c0_i32_1 = arith.constant 0 : i32
    return %c0_i32, %c0_i32_0 : i32, i32
  }
  func.func @transform_2(%arg0: i32) -> (i32, i32) {
    %c0_i32 = arith.constant 0 : i32
    %c0_i32_0 = arith.constant 0 : i32
    %c0_i32_1 = arith.constant 0 : i32
    return %c0_i32, %c0_i32_0 : i32, i32
  }
  func.func @transform_3(%arg0: i32) -> (i32, i32) {
    %c0_i32 = arith.constant 0 : i32
    %c0_i32_0 = arith.constant 0 : i32
    return %arg0, %c0_i32 : i32, i32
  }
}

</mosaic_0001>

<llo_original>
// kernel: conv2d_relu_bn.1
$region0: #{conv2d_relu_bn.1}
  #allocation0 [shape = 'u32[]', space=smem, size = 0x4, offset = 0x4, fixed_abs, tag = 'smem constant byte address 0x4 - core index']
  #allocation1 [shape = 'u32[72,128]{1,0:T(1,128)}', space=vmem, size = 0x9000, scoped, tag = 'internal scratch']
  %s0 = inlined_call_operand.vmem [shape: f32[512,36], index: 0, kind: input, shape index: {}]
  %s1 = inlined_call_operand.vmem [shape: f32[36,128], index: 1, kind: input, shape index: {}]
  %s2 = inlined_call_operand.vmem [shape: f32[8,128], index: 2, kind: input, shape index: {}]
  %s3 = inlined_call_operand.hbm [shape: f32[512,128], index: 3, kind: output, shape index: {}]
  %s4 = sld [smem:[#allocation0]]
  $region45: #{conv2d_relu_bn.1} parent=0
    _
  %s6 = ssub.s32 1, %s4
  %s7 = scalar_select 0, %s6, %s4
  $region1: #{conv2d_relu_bn.1} parent=0
    #allocation2 [shape = 'u8[131072]{0}', space=vmem, size = 0x20000, scoped, tag = 'output window, operand 0']
    #allocation3 [shape = 's32[2]{0}', space=sflag, size = 0x8, scoped, tag = 'scoped memory for conv2d_relu_bn.1']
    %8 = vsyncpa [#allocation3], 0
    %s9 = scalar_lea.sflag [#allocation3], 1
    %10 = vsyncpa %s9, 0
    loop: start=0, step=1, limit=6
    $region2: #{conv2d_relu_bn.1} parent=1 // loop_pre_header
      _
    $region3: #{conv2d_relu_bn.1} parent=1 // loop_header
      %s12 = sphi 0, %s16
      %p13 = scmp.ge.s32.totalorder %s12, 6
      %s22 = sphi 0, %s24
      %s25 = sphi 0, %s22
      %s26 = sphi 0, %s25
      %s42 = sphi 0, %s26
      %s46 = sphi 0, %s46
      %s48 = sphi 0, %s46
      %s49 = sphi 0, %s48
      %s63 = sphi 0, %s49
      %s67 = sphi 0, %s67
      %s69 = sphi 0, %s67
      %s70 = sphi 0, %s69
      %s84 = sphi 0, %s70
      %s90 = sphi 0, %s92
      %s93 = sphi 0, %s90
      %s94 = sphi 0, %s93
      %s110 = sphi 0, %s94
    $region4: #{conv2d_relu_bn.1} parent=1 // loop_header_branch
      %15 = sbr.rel (%p13) target = $region8
    $region5: #{conv2d_relu_bn.1} parent=1 // loop_body
      %s17 = ssub.s32 %s12, 1
      %s18 = ssub.s32 %s12, 2
      %s19 = sadd.s32 %s12, 1
      %s20 = ssub.s32 %s12, %s19
      %p21 = scmp.eq.s32.totalorder %s20, 0
      %s23 = sadd.s32 %s22, 1
      %s24 = scalar_select %p21, %s22, %s23
      %p27 = pneg %p21
      %p28 = scmp.eq.s32.totalorder %s12, 3
      %p29 = por %p27, %p28
      %p30 = scmp.ne.s32.totalorder %s22, %s25
      %p31 = scmp.eq.s32.totalorder %s12, 0
      %p32 = por %p30, %p31
      %p33 = scmp.ne.s32.totalorder %s22, %s25
      %p34 = scmp.eq.s32.totalorder %s17, 3
      %p35 = por %p33, %p34
      %p36 = scmp.ne.s32.totalorder %s25, %s26
      %p37 = scmp.eq.s32.totalorder %s17, 0
      %p38 = por %p36, %p37
      %p39 = scmp.ne.s32.totalorder %s25, %s26
      %p40 = scmp.eq.s32.totalorder %s18, 3
      %p41 = por %p39, %p40
      %p43 = scmp.ne.s32.totalorder %s26, %s42
      %p44 = scmp.eq.s32.totalorder %s18, 0
      %p45 = por %p43, %p44
      %s47 = sadd.s32 %s46, 1
      %p50 = scmp.eq.s32.totalorder %s12, 3
      %p51 = scmp.ne.s32.totalorder %s46, %s48
      %p52 = scmp.eq.s32.totalorder %s12, 0
      %p53 = por %p51, %p52
      %p54 = scmp.ne.s32.totalorder %s46, %s48
      %p55 = scmp.eq.s32.totalorder %s17, 3
      %p56 = por %p54, %p55
      %p57 = scmp.ne.s32.totalorder %s48, %s49
      %p58 = scmp.eq.s32.totalorder %s17, 0
      %p59 = por %p57, %p58
      %p60 = scmp.ne.s32.totalorder %s48, %s49
      %p61 = scmp.eq.s32.totalorder %s18, 3
      %p62 = por %p60, %p61
      %p64 = scmp.ne.s32.totalorder %s49, %s63
      %p65 = scmp.eq.s32.totalorder %s18, 0
      %p66 = por %p64, %p65
      %s68 = sadd.s32 %s67, 1
      %p71 = scmp.eq.s32.totalorder %s12, 3
      %p72 = scmp.ne.s32.totalorder %s67, %s69
      %p73 = scmp.eq.s32.totalorder %s12, 0
      %p74 = por %p72, %p73
      %p75 = scmp.ne.s32.totalorder %s67, %s69
      %p76 = scmp.eq.s32.totalorder %s17, 3
      %p77 = por %p75, %p76
      %p78 = scmp.ne.s32.totalorder %s69, %s70
      %p79 = scmp.eq.s32.totalorder %s17, 0
      %p80 = por %p78, %p79
      %p81 = scmp.ne.s32.totalorder %s69, %s70
      %p82 = scmp.eq.s32.totalorder %s18, 3
      %p83 = por %p81, %p82
      %p85 = scmp.ne.s32.totalorder %s70, %s84
      %p86 = scmp.eq.s32.totalorder %s18, 0
      %p87 = por %p85, %p86
      %s88 = ssub.s32 %s12, %s19
      %p89 = scmp.eq.s32.totalorder %s88, 0
      %s91 = sadd.s32 %s90, 1
      %s92 = scalar_select %p89, %s90, %s91
      %p95 = pneg %p89
      %p96 = scmp.eq.s32.totalorder %s12, 3
      %p97 = por %p95, %p96
      %p98 = scmp.ne.s32.totalorder %s90, %s93
      %p99 = scmp.eq.s32.totalorder %s12, 0
      %p100 = por %p98, %p99
      %p101 = scmp.ne.s32.totalorder %s90, %s93
      %p102 = scmp.eq.s32.totalorder %s17, 3
      %p103 = por %p101, %p102
      %p104 = scmp.ne.s32.totalorder %s93, %s94
      %p105 = scmp.eq.s32.totalorder %s17, 0
      %p106 = por %p104, %p105
      %p107 = scmp.ne.s32.totalorder %s93, %s94
      %p108 = scmp.eq.s32.totalorder %s18, 3
      %p109 = por %p107, %p108
      %p111 = scmp.ne.s32.totalorder %s94, %s110
      %p112 = scmp.eq.s32.totalorder %s18, 0
      %p113 = por %p111, %p112
      %p114 = scmp.le.s32.totalorder 1, %s12
      %p115 = scmp.lt.s32.totalorder %s12, 5
      %p116 = pnand %p114, %p115
      %p117 = pneg %p116
      // Predicated region
      $region9: #{conv2d_relu_bn.1} parent=5 // pred_check
        _
      $region10: #{conv2d_relu_bn.1} parent=5 // pred_check_branch
        %119 = sbr.rel (%p116) target = $region12
      $region11: #{conv2d_relu_bn.1} parent=5 // pred_region
        %s120 = ssub.s32 %s12, 1
        // Predicated region
        $region13: #{conv2d_relu_bn.1} parent=11 // pred_check
          %p121 = pneg %p59
        $region14: #{conv2d_relu_bn.1} parent=11 // pred_check_branch
          %123 = sbr.rel (%p121) target = $region16
        $region15: #{conv2d_relu_bn.1} parent=11 // pred_region
          _
        $region16: #{conv2d_relu_bn.1} parent=11 // pred_fallthru
          _
        // Predicated region
        $region17: #{conv2d_relu_bn.1} parent=11 // pred_check
          %p124 = pneg %p80
        $region18: #{conv2d_relu_bn.1} parent=11 // pred_check_branch
          %126 = sbr.rel (%p124) target = $region20
        $region19: #{conv2d_relu_bn.1} parent=11 // pred_region
          _
        $region20: #{conv2d_relu_bn.1} parent=11 // pred_fallthru
          _
      $region12: #{conv2d_relu_bn.1} parent=5 // pred_fallthru
        _
      %p127 = scmp.lt.s32.totalorder %s12, 4
      // Predicated region
      $region21: #{conv2d_relu_bn.1} parent=5 // pred_check
        %p128 = pneg %p127
      $region22: #{conv2d_relu_bn.1} parent=5 // pred_check_branch
        %130 = sbr.rel (%p128) target = $region24
      $region23: #{conv2d_relu_bn.1} parent=5 // pred_region
        // Predicated region
        $region25: #{conv2d_relu_bn.1} parent=23 // pred_check
          %p131 = pneg %p32
        $region26: #{conv2d_relu_bn.1} parent=23 // pred_check_branch
          %133 = sbr.rel (%p131) target = $region28
        $region27: #{conv2d_relu_bn.1} parent=23 // pred_region
          %s134 = smul.u32 16, %s12
          %p135 = scmp.lt.s32.totalorder %s134, 63
          %s136 = scalar_select %p135, %s134, 63
          %s137 = smul.addr %s136, 8
          %s138 = scalar_lea.vmem %s0, %s137
          %s139 = smul.u32 16, %s12
        $region28: #{conv2d_relu_bn.1} parent=23 // pred_fallthru
          _
      $region24: #{conv2d_relu_bn.1} parent=5 // pred_fallthru
        _
      %p140 = scmp.le.s32.totalorder 1, %s12
      %p141 = scmp.lt.s32.totalorder %s12, 5
      %p142 = pnand %p140, %p141
      %p143 = pneg %p142
      // Predicated region
      $region29: #{conv2d_relu_bn.1} parent=5 // pred_check
        _
      $region30: #{conv2d_relu_bn.1} parent=5 // pred_check_branch
        %145 = sbr.rel (%p142) target = $region32
      $region31: #{conv2d_relu_bn.1} parent=5 // pred_region
        %s146 = ssub.s32 %s12, 1
        %s147 = smul.u32 16, %s17
        %p148 = scmp.lt.s32.totalorder %s147, 63
        %s149 = scalar_select %p148, %s147, 63
        %s150 = smul.addr %s149, 8
        %s151 = scalar_lea.vmem %s0, %s150
        %p152 = pneg %p38
        %p153 = pneg %p35
        %p154 = pneg %p59
        %p155 = pneg %p56
        %p156 = pneg %p80
        %p157 = pneg %p77
        %p158 = pneg %p106
        %p159 = pneg %p103
        %s160 = sand.u32 %s93, 1
        %s161 = scalar_lea.sflag [#allocation3], %s160
        %s162 = sand.u32 %s93, 1
        %s163 = smul.addr %s162, 128
        %s164 = scalar_lea.vmem [#allocation2], %s163
        %s165 = smul.u32 16, %s17
        %p166 = scmp.lt.s32.totalorder %s165, 63
        %s167 = scalar_select %p166, %s165, 63
        %s168 = smul.addr %s167, 8
        %s169 = scalar_lea.vmem %s0, %s168
        %s170 = smul.u32 16, %s17
        %s171 = smul.u32 16, %s17
        %v172 = vld [vmem:[%s169] sm:$0xff]
        %v173 = vld [vmem:[%s169 + $0x8] sm:$0xff]
        %v174 = vld [vmem:[%s169 + $0x10] sm:$0xff]
        %v175 = vld [vmem:[%s169 + $0x18] sm:$0xff]
        %v176 = vld [vmem:[%s169 + $0x20] sm:$0xff]
        %v177 = vld [vmem:[%s169 + $0x28] sm:$0xff]
        %v178 = vld [vmem:[%s169 + $0x30] sm:$0xff]
        %v179 = vld [vmem:[%s169 + $0x38] sm:$0xff]
        %v180 = vld [vmem:[%s169 + $0x40] sm:$0xff]
        %v181 = vld [vmem:[%s169 + $0x48] sm:$0xff]
        %v182 = vld [vmem:[%s169 + $0x50] sm:$0xff]
        %v183 = vld [vmem:[%s169 + $0x58] sm:$0xff]
        %v184 = vld [vmem:[%s169 + $0x60] sm:$0xff]
        %v185 = vld [vmem:[%s169 + $0x68] sm:$0xff]
        %v186 = vld [vmem:[%s169 + $0x70] sm:$0xff]
        %v187 = vld [vmem:[%s169 + $0x78] sm:$0xff]
        %v188 = vld [vmem:[%s1] sm:$0xff]
        %v189 = vld [vmem:[%s1 + $0x8] sm:$0xff]
        %v190 = vld [vmem:[%s1 + $0x10] sm:$0xff]
        %v191 = vld [vmem:[%s1 + $0x18] sm:$0xff]
        %v192 = vld [vmem:[%s1 + $0x20] sm:$0xf]
        %v193 = vld [vmem:[%s2] sm:$0xff]
        %v194 = vperm.slane %v193, 0
        %vm195 = vcmask 293888
        %v197 = vsel %vm195, %v172, 0
        %v200 = vsel %vm195, %v173, 0
        %v203 = vsel %vm195, %v174, 0
        %v206 = vsel %vm195, %v175, 0
        %v209 = vsel %vm195, %v176, 0
        %v212 = vsel %vm195, %v177, 0
        %v215 = vsel %vm195, %v178, 0
        %v218 = vsel %vm195, %v179, 0
        %v221 = vsel %vm195, %v180, 0
        %v224 = vsel %vm195, %v181, 0
        %v227 = vsel %vm195, %v182, 0
        %v230 = vsel %vm195, %v183, 0
        %v233 = vsel %vm195, %v184, 0
        %v236 = vsel %vm195, %v185, 0
        %v239 = vsel %vm195, %v186, 0
        %v242 = vsel %vm195, %v187, 0
        %vm244 = vcmask 1043456
        %v246 = vsel %vm244, %v192, 0
        %248 = vmatpush.msra.mxu0 0.0
        %249 = vmatpush.msra.mxu0 0.0
        %250 = vmatpush.msra.mxu0 0.0
        %251 = vmatpush.msra.mxu0 0.0
        %252 = vmatpush.msra.mxu0 0.0
        %253 = vmatpush.msra.mxu0 0.0
        %254 = vmatpush.msra.mxu0 0.0
        %255 = vmatpush.msra.mxu0 0.0
        %256 = vmatpush.msra.mxu0 0.0
        %257 = vmatpush.msra.mxu0 0.0
        %258 = vmatpush.msra.mxu0 0.0
        %259 = vmatpush.msra.mxu0 %v246
        %260 = vmatpush.msra.mxu0 %v191
        %261 = vmatpush.msra.mxu0 %v190
        %262 = vmatpush.msra.mxu0 %v189
        %263 = vmatpush.msra.mxu0 %v188
        %264 = vmatmul.f32.gmra.mxu0 %v197
        %v265 = vpop.f32.mrf.mxu0
        %v266 = vadd.f32 %v194, %v265
        %267 = vmatmul.f32.gmra.mxu0 %v200
        %v268 = vpop.f32.mrf.mxu0
        %v269 = vadd.f32 %v194, %v268
        %270 = vmatmul.f32.gmra.mxu0 %v203
        %v271 = vpop.f32.mrf.mxu0
        %v272 = vadd.f32 %v194, %v271
        %273 = vmatmul.f32.gmra.mxu0 %v206
        %v274 = vpop.f32.mrf.mxu0
        %v275 = vadd.f32 %v194, %v274
        %276 = vmatmul.f32.gmra.mxu0 %v209
        %v277 = vpop.f32.mrf.mxu0
        %v278 = vadd.f32 %v194, %v277
        %279 = vmatmul.f32.gmra.mxu0 %v212
        %v280 = vpop.f32.mrf.mxu0
        %v281 = vadd.f32 %v194, %v280
        %282 = vmatmul.f32.gmra.mxu0 %v215
        %v283 = vpop.f32.mrf.mxu0
        %v284 = vadd.f32 %v194, %v283
        %285 = vmatmul.f32.gmra.mxu0 %v218
        %v286 = vpop.f32.mrf.mxu0
        %v287 = vadd.f32 %v194, %v286
        %288 = vmatmul.f32.gmra.mxu0 %v221
        %v289 = vpop.f32.mrf.mxu0
        %v290 = vadd.f32 %v194, %v289
        %291 = vmatmul.f32.gmra.mxu0 %v224
        %v292 = vpop.f32.mrf.mxu0
        %v293 = vadd.f32 %v194, %v292
        %294 = vmatmul.f32.gmra.mxu0 %v227
        %v295 = vpop.f32.mrf.mxu0
        %v296 = vadd.f32 %v194, %v295
        %297 = vmatmul.f32.gmra.mxu0 %v230
        %v298 = vpop.f32.mrf.mxu0
        %v299 = vadd.f32 %v194, %v298
        %300 = vmatmul.f32.gmra.mxu0 %v233
        %v301 = vpop.f32.mrf.mxu0
        %v302 = vadd.f32 %v194, %v301
        %303 = vmatmul.f32.gmra.mxu0 %v236
        %v304 = vpop.f32.mrf.mxu0
        %v305 = vadd.f32 %v194, %v304
        %306 = vmatmul.f32.gmra.mxu0 %v239
        %v307 = vpop.f32.mrf.mxu0
        %v308 = vadd.f32 %v194, %v307
        %309 = vmatmul.f32.gmra.mxu0 %v242
        %v310 = vpop.f32.mrf.mxu0
        %v311 = vadd.f32 %v194, %v310
        %312 = vdwg.mxu0
        %v313 = vmax.f32 %v266, 0.0
        %v314 = vmax.f32 %v269, 0.0
        %v315 = vmax.f32 %v272, 0.0
        %v316 = vmax.f32 %v275, 0.0
        %v317 = vmax.f32 %v278, 0.0
        %v318 = vmax.f32 %v281, 0.0
        %v319 = vmax.f32 %v284, 0.0
        %v320 = vmax.f32 %v287, 0.0
        %v321 = vmax.f32 %v290, 0.0
        %v322 = vmax.f32 %v293, 0.0
        %v323 = vmax.f32 %v296, 0.0
        %v324 = vmax.f32 %v299, 0.0
        %v325 = vmax.f32 %v302, 0.0
        %v326 = vmax.f32 %v305, 0.0
        %v327 = vmax.f32 %v308, 0.0
        %v328 = vmax.f32 %v311, 0.0
        %v329 = vperm.slane %v193, 1
        %v330 = vmul.f32 %v313, %v329
        %v331 = vmul.f32 %v314, %v329
        %v332 = vmul.f32 %v315, %v329
        %v333 = vmul.f32 %v316, %v329
        %v334 = vmul.f32 %v317, %v329
        %v335 = vmul.f32 %v318, %v329
        %v336 = vmul.f32 %v319, %v329
        %v337 = vmul.f32 %v320, %v329
        %v338 = vmul.f32 %v321, %v329
        %v339 = vmul.f32 %v322, %v329
        %v340 = vmul.f32 %v323, %v329
        %v341 = vmul.f32 %v324, %v329
        %v342 = vmul.f32 %v325, %v329
        %v343 = vmul.f32 %v326, %v329
        %v344 = vmul.f32 %v327, %v329
        %v345 = vmul.f32 %v328, %v329
        %v346 = vperm.slane %v193, 2
        %v347 = vadd.f32 %v330, %v346
        %v348 = vadd.f32 %v331, %v346
        %v349 = vadd.f32 %v332, %v346
        %v350 = vadd.f32 %v333, %v346
        %v351 = vadd.f32 %v334, %v346
        %v352 = vadd.f32 %v335, %v346
        %v353 = vadd.f32 %v336, %v346
        %v354 = vadd.f32 %v337, %v346
        %v355 = vadd.f32 %v338, %v346
        %v356 = vadd.f32 %v339, %v346
        %v357 = vadd.f32 %v340, %v346
        %v358 = vadd.f32 %v341, %v346
        %v359 = vadd.f32 %v342, %v346
        %v360 = vadd.f32 %v343, %v346
        %v361 = vadd.f32 %v344, %v346
        %v362 = vadd.f32 %v345, %v346
        %363 = vst [vmem:[%s164] sm:$0xff] %v347
        %364 = vst [vmem:[%s164 + $0x8] sm:$0xff] %v348
        %365 = vst [vmem:[%s164 + $0x10] sm:$0xff] %v349
        %366 = vst [vmem:[%s164 + $0x18] sm:$0xff] %v350
        %367 = vst [vmem:[%s164 + $0x20] sm:$0xff] %v351
        %368 = vst [vmem:[%s164 + $0x28] sm:$0xff] %v352
        %369 = vst [vmem:[%s164 + $0x30] sm:$0xff] %v353
        %370 = vst [vmem:[%s164 + $0x38] sm:$0xff] %v354
        %371 = vst [vmem:[%s164 + $0x40] sm:$0xff] %v355
        %372 = vst [vmem:[%s164 + $0x48] sm:$0xff] %v356
        %373 = vst [vmem:[%s164 + $0x50] sm:$0xff] %v357
        %374 = vst [vmem:[%s164 + $0x58] sm:$0xff] %v358
        %375 = vst [vmem:[%s164 + $0x60] sm:$0xff] %v359
        %376 = vst [vmem:[%s164 + $0x68] sm:$0xff] %v360
        %377 = vst [vmem:[%s164 + $0x70] sm:$0xff] %v361
        %378 = vst [vmem:[%s164 + $0x78] sm:$0xff] %v362
        %s379 = sand.u32 %s93, 1
        %s380 = scalar_lea.sflag [#allocation3], %s379
        %s381 = sand.u32 %s93, 1
        %s382 = smul.addr %s381, 128
        %s383 = scalar_lea.vmem [#allocation2], %s382
        // Predicated region
        $region33: #{conv2d_relu_bn.1} parent=31 // pred_check
          %p384 = pneg %p103
        $region34: #{conv2d_relu_bn.1} parent=31 // pred_check_branch
          %386 = sbr.rel (%p384) target = $region36
        $region35: #{conv2d_relu_bn.1} parent=31 // pred_region
          %s387 = smul.u32 16, %s17
          %389 = vsyncadd %s380, 0
          %s390 = smul.addr %s387, 8
          %s391 = scalar_lea.hbm %s3, %s390
          %s392 = sshll.u32 %s383, 4
          %s393 = int_to_ptr.vmem [resolvable:$true] %s392
          %s394 = sshll.u32 %s391, 4
          %s395 = int_to_ptr.hbm [resolvable:$true] %s394
          %400 = dma.vmem_to_hbm [thread:$0]  %s393, 2048, %s395, %s380, 128, 128, 8
        $region36: #{conv2d_relu_bn.1} parent=31 // pred_fallthru
          _
      $region32: #{conv2d_relu_bn.1} parent=5 // pred_fallthru
        _
      %p401 = scmp.le.s32.totalorder 2, %s12
      // Predicated region
      $region37: #{conv2d_relu_bn.1} parent=5 // pred_check
        %p402 = pneg %p401
      $region38: #{conv2d_relu_bn.1} parent=5 // pred_check_branch
        %404 = sbr.rel (%p402) target = $region40
      $region39: #{conv2d_relu_bn.1} parent=5 // pred_region
        %s405 = ssub.s32 %s12, 2
        // Predicated region
        $region41: #{conv2d_relu_bn.1} parent=39 // pred_check
          %p406 = pneg %p109
        $region42: #{conv2d_relu_bn.1} parent=39 // pred_check_branch
          %408 = sbr.rel (%p406) target = $region44
        $region43: #{conv2d_relu_bn.1} parent=39 // pred_region
          %s409 = sand.u32 %s94, 1
          %s410 = scalar_lea.sflag [#allocation3], %s409
          %s411 = sand.u32 %s94, 1
          %s412 = smul.addr %s411, 128
          %s413 = scalar_lea.vmem [#allocation2], %s412
          %415 = dma.done %s410, 2048
        $region44: #{conv2d_relu_bn.1} parent=39 // pred_fallthru
          _
      $region40: #{conv2d_relu_bn.1} parent=5 // pred_fallthru
        _
    $region6: #{conv2d_relu_bn.1} parent=1 // loop_footer
      %s16 = sadd.s32 1, %s12
    $region7: #{conv2d_relu_bn.1} parent=1 // loop_footer_branch
      %11 = sbr.rel target = $region3
    $region8: #{conv2d_relu_bn.1} parent=1 // loop_exit
      _
    %416 = vsyncpa [#allocation3], 1
    %s417 = scalar_lea.sflag [#allocation3], 1
    %418 = vsyncpa %s417, 1

</llo_original>
